<compile_context>
chip_gen: v7x
topology: tpu7x:2x2x1
jax: 0.10.0
libtpu: 0.0.40
codegen_flags: <defaults>
</compile_context>

<pallas_src>
import functools

import jax
import jax.numpy as jnp
from jax.experimental import pallas as pl
from jax.experimental.pallas import tpu as pltpu


def tmd_kernel(xf_ref, wp_ref, bp_ref, w1_ref, b1_ref, w2_ref, t_ref,
               b2_ref, dt_ref, out_ref, *, epsilon):
    # ---- proj_list: Linear(F -> L_latent) ------------------------------------
    x = xf_ref[...]                                                    # (n, Fp)
    z = jnp.dot(x, wp_ref[...], preferred_element_type=jnp.float32) + bp_ref[...]  # (n, L)

    # ---- pairwise squared distances via Gram (contracting-dim matmul, no z.T)
    sq = jnp.sum(z * z, axis=-1, keepdims=True)                        # (n, 1)
    gram = jax.lax.dot_general(z, z, (((1,), (1,)), ((), ())),
                               preferred_element_type=jnp.float32)     # (n, n)
    dist = jnp.maximum(sq + jnp.transpose(sq) - 2.0 * gram, 0.0)       # clamp f32 cancellation
    k_eps = jnp.exp((-1.0 / (4.0 * epsilon)) * dist)                   # K_epsilon (n, n)
    q = jnp.sum(k_eps, axis=1, keepdims=True)                          # q_epsilon_tilde (n, 1)

    # ---- pi_list: Linear(L -> Fp) -> ReLU -> Linear(Fp -> 1) -> Sigmoid ------
    h1 = jnp.maximum(
        jnp.dot(z, w1_ref[...], preferred_element_type=jnp.float32) + b1_ref[...],
        0.0)                                                           # (n, Fp)
    # (Fp, 1) matmul folded into VPU multiply + row reduce (w2 stored as (1, Fp))
    logits = jnp.sum(h1 * w2_ref[...], axis=-1, keepdims=True) + b2_ref[0, 0]   # (n, 1)
    pi = pl.reciprocal(1.0 + jnp.exp(-logits), approx=True)            # sigmoid, (n, 1)

    # ---- K_tilde = K_epsilon @ diag(pi / q)  (column scaling) ----------------
    col_scale = jnp.transpose(pi * pl.reciprocal(q, approx=True))      # (1, n)
    k_tilde = k_eps * col_scale                                        # (n, n)
    d = jnp.sum(k_tilde, axis=1, keepdims=True) + 1e-5                 # (n, 1)

    # ---- out = t + dt * (L @ t) with L = (1/eps) D^-1 K_tilde - I folded:
    #      out = (1 - dt) * t + (dt/eps) * (K_tilde @ t) / d
    t = t_ref[...]                                                     # (n, Ftp)
    dt = dt_ref[0, 0]
    kt = jnp.dot(k_tilde, t, preferred_element_type=jnp.float32)       # (n, Ftp)
    inv_d = pl.reciprocal(d, approx=True)                              # (n, 1)
    out_ref[...] = (1.0 - dt) * t + (dt / epsilon) * (kt * inv_d)


def init_tmd_params(key, in_features, l_latent):
    """Deterministic PyTorch-Linear-style (uniform +-1/sqrt(fan_in)) init.

    Weights stored as (in, out) so the kernel computes x @ W + b.
    """
    ks = jax.random.split(key, 6)

    def lin(kw, kb, fan_in, fan_out):
        bound = 1.0 / jnp.sqrt(jnp.float32(fan_in))
        w = jax.random.uniform(kw, (fan_in, fan_out), jnp.float32, -bound, bound)
        b = jax.random.uniform(kb, (1, fan_out), jnp.float32, -bound, bound)
        return w, b

    wp, bp = lin(ks[0], ks[1], in_features, l_latent)   # proj_list
    w1, b1 = lin(ks[2], ks[3], l_latent, in_features)   # pi_list[0]
    w2, b2 = lin(ks[4], ks[5], in_features, 1)          # pi_list[2]
    dt = jnp.full((1, 1), 0.1, dtype=jnp.float32)       # nn.Parameter([0.1])
    return dict(wp=wp, bp=bp, w1=w1, b1=b1, w2=w2, b2=b2, dt=dt)


def _pad_axis(a, axis, mult=128):
    pad = (-a.shape[axis]) % mult
    if pad == 0:
        return a
    widths = [(0, 0)] * a.ndim
    widths[axis] = (0, pad)
    return jnp.pad(a, widths)


def tmd_layer_forward(x, f, params, *, epsilon=0.25, base=False):
    """Pallas TMDLayer.forward. x: (n, C, H, W) float32, f: callable.

    Call under jax.jit so the target->output buffer alias is handled by XLA.
    """
    n = x.shape[0]
    xf = x.reshape(n, -1).astype(jnp.float32)            # x.view(1, n, -1) sample rows

    x_for_f = x.reshape(n, -1) if base else x
    target = f(x_for_f)
    tshape = target.shape
    tflat = target.reshape(n, -1).astype(jnp.float32)
    ft = tflat.shape[1]

    # Lane-pad feature dims to multiples of 128 (zero padding is exact:
    # padded input columns hit zero weight rows; padded h1 columns hit zero w2;
    # padded target columns stay zero and are sliced off).
    xf_p = _pad_axis(xf, 1)                              # (n, Fp)
    wp_p = _pad_axis(params["wp"], 0)                    # (Fp, L)
    w1_p = _pad_axis(params["w1"], 1)                    # (L, Fp)
    b1_p = _pad_axis(params["b1"], 1)                    # (1, Fp)
    w2_p = _pad_axis(params["w2"].reshape(1, -1), 1)     # (1, Fp)
    t_p = _pad_axis(tflat, 1)                            # (n, Ftp)
    ftp = t_p.shape[1]
    b2 = params["b2"].reshape(1, 1)

    vmem = pl.BlockSpec(memory_space=pltpu.MemorySpace.VMEM)
    smem = pl.BlockSpec(memory_space=pltpu.MemorySpace.SMEM)

    out_p = pl.pallas_call(
        functools.partial(tmd_kernel, epsilon=epsilon),
        out_shape=jax.ShapeDtypeStruct((n, ftp), jnp.float32),
        in_specs=[vmem, vmem, vmem, vmem, vmem, vmem, vmem, smem, smem],
        out_specs=vmem,
        input_output_aliases={6: 0},                     # alias target -> output
    )(xf_p, wp_p, params["bp"], w1_p, b1_p, w2_p, t_p, b2, params["dt"])

    return out_p[:, :ft].reshape(tshape)


def tmd_layer_reference(x, f, params, *, epsilon=0.25, base=False):
    """Pure-JAX reference mirroring the PyTorch code (for a correctness check)."""
    n = x.shape[0]
    xf = x.reshape(n, -1)
    z = xf @ params["wp"] + params["bp"]
    diff = z[:, None, :] - z[None, :, :]
    k_eps = jnp.exp(-1.0 / (4.0 * epsilon) * jnp.sum(diff ** 2, axis=2))
    q = jnp.sum(k_eps, axis=1)
    h1 = jnp.maximum(z @ params["w1"] + params["b1"], 0.0)
    pi = jax.nn.sigmoid(h1 @ params["w2"] + params["b2"])[:, 0]
    k_tilde = k_eps * (pi / q)[None, :]
    d = jnp.sum(k_tilde, axis=1) + 1e-5
    L = (1.0 / epsilon) * (k_tilde / d[:, None]) - jnp.eye(n)
    x_for_f = x.reshape(n, -1) if base else x
    target = f(x_for_f)
    tshape = target.shape
    tflat = target.reshape(n, -1)
    return (tflat + params["dt"][0, 0] * (L @ tflat)).reshape(tshape)


if __name__ == "__main__":
    # Small shapes consistent with the module defaults: in_features = C*H*W = 100.
    n, C, H, W = 8, 4, 5, 5
    in_features = C * H * W
    l_latent = 16

    key = jax.random.PRNGKey(0)
    kx, kp = jax.random.split(key)
    x = jax.random.normal(kx, (n, C, H, W), dtype=jnp.float32)
    params = init_tmd_params(kp, in_features, l_latent)

    f = lambda t: t  # the wrapped function f; identity keeps shapes NCHW

    forward = jax.jit(lambda xx, pp: tmd_layer_forward(xx, f, pp, epsilon=0.25, base=False))
    out = forward(x, params)
    out = jax.block_until_ready(out)

    ref = tmd_layer_reference(x, f, params, epsilon=0.25, base=False)
    assert out.shape == (n, C, H, W)
    # approx=True reciprocals (EUP) trade a few ulps of precision for latency.
    assert jnp.allclose(out, ref, atol=1e-3, rtol=1e-3), "mismatch vs reference"

    print("KERNEL_OK")
</pallas_src>

<mosaic_0001>
module attributes {stable_mosaic.version = 11 : i64} {
  func.func @tmd_kernel(%arg0: memref<8x128xf32, #tpu.memory_space<vmem>>, %arg1: memref<128x16xf32, #tpu.memory_space<vmem>>, %arg2: memref<1x16xf32, #tpu.memory_space<vmem>>, %arg3: memref<16x128xf32, #tpu.memory_space<vmem>>, %arg4: memref<1x128xf32, #tpu.memory_space<vmem>>, %arg5: memref<1x128xf32, #tpu.memory_space<vmem>>, %arg6: memref<8x128xf32, #tpu.memory_space<vmem>>, %arg7: memref<1x1xf32, #tpu.memory_space<smem>>, %arg8: memref<1x1xf32, #tpu.memory_space<smem>>, %arg9: memref<8x128xf32, #tpu.memory_space<vmem>>) attributes {dimension_semantics = [], scalar_prefetch = 0 : i64, scratch_operands = 0 : i64, tpu.core_type = #tpu.core_type<tc>} {
    %c0 = arith.constant 0 : index
    %c0_0 = arith.constant 0 : index
    %0 = vector.load %arg0[%c0, %c0_0] : memref<8x128xf32, #tpu.memory_space<vmem>>, vector<8x128xf32>
    %c0_1 = arith.constant 0 : index
    %c0_2 = arith.constant 0 : index
    %1 = vector.load %arg1[%c0_1, %c0_2] : memref<128x16xf32, #tpu.memory_space<vmem>>, vector<128x16xf32>
    %cst = arith.constant dense<0.000000e+00> : vector<8x16xf32>
    %2 = tpu.matmul %0, %1, %cst {dimension_numbers = #tpu.dot_dimension_numbers<[1], [0], [0], [1], [0, 0, 1, 1], [], []>} : vector<8x128xf32>, vector<128x16xf32>, vector<8x16xf32> -> vector<8x16xf32>
    %c0_3 = arith.constant 0 : index
    %c0_4 = arith.constant 0 : index
    %3 = vector.load %arg2[%c0_3, %c0_4] : memref<1x16xf32, #tpu.memory_space<vmem>>, vector<1x16xf32>
    %4 = vector.broadcast %3 : vector<1x16xf32> to vector<8x16xf32>
    %5 = arith.addf %2, %4 : vector<8x16xf32>
    %6 = arith.mulf %5, %5 : vector<8x16xf32>
    %cst_5 = arith.constant dense<0.000000e+00> : vector<8xf32>
    %7 = vector.multi_reduction <add>, %6, %cst_5 [1] : vector<8x16xf32> to vector<8xf32>
    %8 = vector.shape_cast %7 : vector<8xf32> to vector<8x1xf32>
    %cst_6 = arith.constant dense<0.000000e+00> : vector<8x8xf32>
    %9 = tpu.matmul %5, %5, %cst_6 {dimension_numbers = #tpu.dot_dimension_numbers<[1], [1], [0], [0], [0, 0, 1, 0], [], []>} : vector<8x16xf32>, vector<8x16xf32>, vector<8x8xf32> -> vector<8x8xf32>
    %10 = tpu.transpose %8, [1, 0] : vector<8x1xf32> -> vector<1x8xf32>
    %11 = vector.broadcast %8 : vector<8x1xf32> to vector<8x8xf32>
    %12 = vector.broadcast %10 : vector<1x8xf32> to vector<8x8xf32>
    %13 = arith.addf %11, %12 : vector<8x8xf32>
    %cst_7 = arith.constant 2.000000e+00 : f32
    %14 = vector.broadcast %cst_7 : f32 to vector<8x8xf32>
    %15 = arith.mulf %14, %9 : vector<8x8xf32>
    %16 = arith.subf %13, %15 : vector<8x8xf32>
    %cst_8 = arith.constant 0.000000e+00 : f32
    %17 = vector.broadcast %cst_8 : f32 to vector<8x8xf32>
    %18 = arith.maximumf %16, %17 : vector<8x8xf32>
    %cst_9 = arith.constant -1.000000e+00 : f32
    %19 = vector.broadcast %cst_9 : f32 to vector<8x8xf32>
    %20 = arith.mulf %19, %18 : vector<8x8xf32>
    %21 = math.exp %20 : vector<8x8xf32>
    %cst_10 = arith.constant dense<0.000000e+00> : vector<8xf32>
    %22 = vector.multi_reduction <add>, %21, %cst_10 [1] : vector<8x8xf32> to vector<8xf32>
    %23 = vector.shape_cast %22 : vector<8xf32> to vector<8x1xf32>
    %c0_11 = arith.constant 0 : index
    %c0_12 = arith.constant 0 : index
    %24 = vector.load %arg3[%c0_11, %c0_12] : memref<16x128xf32, #tpu.memory_space<vmem>>, vector<16x128xf32>
    %cst_13 = arith.constant dense<0.000000e+00> : vector<8x128xf32>
    %25 = tpu.matmul %5, %24, %cst_13 {dimension_numbers = #tpu.dot_dimension_numbers<[1], [0], [0], [1], [0, 0, 1, 1], [], []>} : vector<8x16xf32>, vector<16x128xf32>, vector<8x128xf32> -> vector<8x128xf32>
    %c0_14 = arith.constant 0 : index
    %c0_15 = arith.constant 0 : index
    %26 = vector.load %arg4[%c0_14, %c0_15] : memref<1x128xf32, #tpu.memory_space<vmem>>, vector<1x128xf32>
    %27 = vector.broadcast %26 : vector<1x128xf32> to vector<8x128xf32>
    %28 = arith.addf %25, %27 : vector<8x128xf32>
    %cst_16 = arith.constant 0.000000e+00 : f32
    %29 = vector.broadcast %cst_16 : f32 to vector<8x128xf32>
    %30 = arith.maximumf %28, %29 : vector<8x128xf32>
    %c0_17 = arith.constant 0 : index
    %c0_18 = arith.constant 0 : index
    %31 = vector.load %arg5[%c0_17, %c0_18] : memref<1x128xf32, #tpu.memory_space<vmem>>, vector<1x128xf32>
    %32 = vector.broadcast %31 : vector<1x128xf32> to vector<8x128xf32>
    %33 = arith.mulf %30, %32 : vector<8x128xf32>
    %cst_19 = arith.constant dense<0.000000e+00> : vector<8xf32>
    %34 = vector.multi_reduction <add>, %33, %cst_19 [1] : vector<8x128xf32> to vector<8xf32>
    %35 = vector.shape_cast %34 : vector<8xf32> to vector<8x1xf32>
    %c0_20 = arith.constant 0 : index
    %c0_21 = arith.constant 0 : index
    %36 = memref.load %arg7[%c0_20, %c0_21] : memref<1x1xf32, #tpu.memory_space<smem>>
    %37 = vector.broadcast %36 : f32 to vector<8x1xf32>
    %38 = arith.addf %35, %37 : vector<8x1xf32>
    %cst_22 = arith.constant 0.000000e+00 : f32
    %39 = vector.broadcast %cst_22 : f32 to vector<8x1xf32>
    %40 = arith.subf %39, %38 : vector<8x1xf32>
    %41 = math.exp %40 : vector<8x1xf32>
    %cst_23 = arith.constant 1.000000e+00 : f32
    %42 = vector.broadcast %cst_23 : f32 to vector<8x1xf32>
    %43 = arith.addf %42, %41 : vector<8x1xf32>
    %44 = tpu.reciprocal %43 {approx = true} : vector<8x1xf32> -> vector<8x1xf32>
    %45 = tpu.reciprocal %23 {approx = true} : vector<8x1xf32> -> vector<8x1xf32>
    %46 = arith.mulf %44, %45 : vector<8x1xf32>
    %47 = tpu.transpose %46, [1, 0] : vector<8x1xf32> -> vector<1x8xf32>
    %48 = vector.broadcast %47 : vector<1x8xf32> to vector<8x8xf32>
    %49 = arith.mulf %21, %48 : vector<8x8xf32>
    %cst_24 = arith.constant dense<0.000000e+00> : vector<8xf32>
    %50 = vector.multi_reduction <add>, %49, %cst_24 [1] : vector<8x8xf32> to vector<8xf32>
    %51 = vector.shape_cast %50 : vector<8xf32> to vector<8x1xf32>
    %cst_25 = arith.constant 9.99999974E-6 : f32
    %52 = vector.broadcast %cst_25 : f32 to vector<8x1xf32>
    %53 = arith.addf %51, %52 : vector<8x1xf32>
    %c0_26 = arith.constant 0 : index
    %c0_27 = arith.constant 0 : index
    %54 = vector.load %arg6[%c0_26, %c0_27] : memref<8x128xf32, #tpu.memory_space<vmem>>, vector<8x128xf32>
    %c0_28 = arith.constant 0 : index
    %c0_29 = arith.constant 0 : index
    %55 = memref.load %arg8[%c0_28, %c0_29] : memref<1x1xf32, #tpu.memory_space<smem>>
    %cst_30 = arith.constant dense<0.000000e+00> : vector<8x128xf32>
    %56 = tpu.matmul %49, %54, %cst_30 {dimension_numbers = #tpu.dot_dimension_numbers<[1], [0], [0], [1], [0, 0, 1, 1], [], []>} : vector<8x8xf32>, vector<8x128xf32>, vector<8x128xf32> -> vector<8x128xf32>
    %57 = tpu.reciprocal %53 {approx = true} : vector<8x1xf32> -> vector<8x1xf32>
    %cst_31 = arith.constant 1.000000e+00 : f32
    %58 = arith.subf %cst_31, %55 : f32
    %59 = vector.broadcast %58 : f32 to vector<8x128xf32>
    %60 = arith.mulf %59, %54 : vector<8x128xf32>
    %cst_32 = arith.constant 2.500000e-01 : f32
    %61 = arith.divf %55, %cst_32 : f32
    %62 = vector.broadcast %57 : vector<8x1xf32> to vector<8x128xf32>
    %63 = arith.mulf %56, %62 : vector<8x128xf32>
    %64 = vector.broadcast %61 : f32 to vector<8x128xf32>
    %65 = arith.mulf %64, %63 : vector<8x128xf32>
    %66 = arith.addf %60, %65 : vector<8x128xf32>
    %c0_33 = arith.constant 0 : index
    %c0_34 = arith.constant 0 : index
    %67 = vector.load %arg9[%c0_33, %c0_34] : memref<8x128xf32, #tpu.memory_space<vmem>>, vector<8x128xf32>
    tpu.vector_store %arg9[%c0_33, %c0_34], %66 {strides = array<i32>} : memref<8x128xf32, #tpu.memory_space<vmem>>, vector<8x128xf32>,
    return
  }
}

</mosaic_0001>

<llo_original>
// kernel: _lambda_.1
$region0: #{_lambda_.1}
  #allocation0 [shape = 'u32[]', space=smem, size = 0x4, offset = 0x4, fixed_abs, tag = 'smem constant byte address 0x4 - core index']
  #allocation1 [shape = 'u32[144,128]{1,0:T(1,128)}', space=vmem, size = 0x12000, scoped, tag = 'internal scratch']
  #allocation2 [shape = 'f32[1,1]{1,0:T(1,128)S(6)}', space=smem, size = 0x200, scoped, tag = 'scoped memory for _lambda_.1']
  #allocation3 [shape = 'f32[1,1]{1,0:T(1,128)S(6)}', space=smem, size = 0x200, scoped, tag = 'scoped memory for _lambda_.1']
  %s0 = inlined_call_operand.vmem [shape: f32[8,128], index: 0, kind: input, shape index: {}]
  %s1 = inlined_call_operand.vmem [shape: f32[128,16], index: 1, kind: input, shape index: {}]
  %s2 = inlined_call_operand.vmem [shape: f32[1,16], index: 2, kind: input, shape index: {}]
  %s3 = inlined_call_operand.vmem [shape: f32[16,128], index: 3, kind: input, shape index: {}]
  %s4 = inlined_call_operand.vmem [shape: f32[1,128], index: 4, kind: input, shape index: {}]
  %s5 = inlined_call_operand.vmem [shape: f32[1,128], index: 5, kind: input, shape index: {}]
  %s6 = inlined_call_operand.vmem [shape: f32[8,128], index: 6, kind: input, shape index: {}, may-alias: {6,9}]
  %s7 = inlined_call_operand.<no memory space> [shape: f32[1,1], index: 7, kind: input, shape index: {}]
  %s8 = inlined_call_operand.<no memory space> [shape: f32[1,1], index: 8, kind: input, shape index: {}]
  %s9 = inlined_call_operand.vmem [shape: f32[8,128], index: 9, kind: output, shape index: {}, may-alias: {6,9}]
  %s10 = sld [smem:[#allocation0]]
  $region46: #{_lambda_.1} parent=0
    _
  %s12 = ssub.s32 1, %s10
  %s13 = scalar_select 0, %s12, %s10
  %14 = sst [smem:[#allocation2]] %s7
  %15 = sst [smem:[#allocation3]] %s8
  // Predicated region
  $region2: #{_lambda_.1} parent=0 // pred_check
    _
  $region3: #{_lambda_.1} parent=0 // pred_check_branch
    %17 = sbr.rel (0) target = $region5
  $region4: #{_lambda_.1} parent=0 // pred_region
    _
  $region5: #{_lambda_.1} parent=0 // pred_fallthru
    _
  // Predicated region
  $region6: #{_lambda_.1} parent=0 // pred_check
    _
  $region7: #{_lambda_.1} parent=0 // pred_check_branch
    %19 = sbr.rel (0) target = $region9
  $region8: #{_lambda_.1} parent=0 // pred_region
    _
  $region9: #{_lambda_.1} parent=0 // pred_fallthru
    _
  // Predicated region
  $region10: #{_lambda_.1} parent=0 // pred_check
    _
  $region11: #{_lambda_.1} parent=0 // pred_check_branch
    %21 = sbr.rel (0) target = $region13
  $region12: #{_lambda_.1} parent=0 // pred_region
    _
  $region13: #{_lambda_.1} parent=0 // pred_fallthru
    _
  // Predicated region
  $region14: #{_lambda_.1} parent=0 // pred_check
    _
  $region15: #{_lambda_.1} parent=0 // pred_check_branch
    %23 = sbr.rel (0) target = $region17
  $region16: #{_lambda_.1} parent=0 // pred_region
    _
  $region17: #{_lambda_.1} parent=0 // pred_fallthru
    _
  // Predicated region
  $region18: #{_lambda_.1} parent=0 // pred_check
    _
  $region19: #{_lambda_.1} parent=0 // pred_check_branch
    %25 = sbr.rel (0) target = $region21
  $region20: #{_lambda_.1} parent=0 // pred_region
    _
  $region21: #{_lambda_.1} parent=0 // pred_fallthru
    _
  // Predicated region
  $region22: #{_lambda_.1} parent=0 // pred_check
    _
  $region23: #{_lambda_.1} parent=0 // pred_check_branch
    %27 = sbr.rel (0) target = $region25
  $region24: #{_lambda_.1} parent=0 // pred_region
    _
  $region25: #{_lambda_.1} parent=0 // pred_fallthru
    _
  // Predicated region
  $region26: #{_lambda_.1} parent=0 // pred_check
    _
  $region27: #{_lambda_.1} parent=0 // pred_check_branch
    %29 = sbr.rel (0) target = $region29
  $region28: #{_lambda_.1} parent=0 // pred_region
    _
  $region29: #{_lambda_.1} parent=0 // pred_fallthru
    _
  // Predicated region
  $region30: #{_lambda_.1} parent=0 // pred_check
    _
  $region31: #{_lambda_.1} parent=0 // pred_check_branch
    %31 = sbr.rel (0) target = $region33
  $region32: #{_lambda_.1} parent=0 // pred_region
    _
  $region33: #{_lambda_.1} parent=0 // pred_fallthru
    _
  // Predicated region
  $region34: #{_lambda_.1} parent=0 // pred_check
    _
  $region35: #{_lambda_.1} parent=0 // pred_check_branch
    %33 = sbr.rel (0) target = $region37
  $region36: #{_lambda_.1} parent=0 // pred_region
    _
  $region37: #{_lambda_.1} parent=0 // pred_fallthru
    _
  %v34 = vld [vmem:[%s0] sm:$0xff]
  %v35 = vld [vmem:[%s1] sm:$0xff]
  %v36 = vld [vmem:[%s1 + $0x8] sm:$0xff]
  %v37 = vld [vmem:[%s1 + $0x10] sm:$0xff]
  %v38 = vld [vmem:[%s1 + $0x18] sm:$0xff]
  %v39 = vld [vmem:[%s1 + $0x20] sm:$0xff]
  %v40 = vld [vmem:[%s1 + $0x28] sm:$0xff]
  %v41 = vld [vmem:[%s1 + $0x30] sm:$0xff]
  %v42 = vld [vmem:[%s1 + $0x38] sm:$0xff]
  %v43 = vld [vmem:[%s1 + $0x40] sm:$0xff]
  %v44 = vld [vmem:[%s1 + $0x48] sm:$0xff]
  %v45 = vld [vmem:[%s1 + $0x50] sm:$0xff]
  %v46 = vld [vmem:[%s1 + $0x58] sm:$0xff]
  %v47 = vld [vmem:[%s1 + $0x60] sm:$0xff]
  %v48 = vld [vmem:[%s1 + $0x68] sm:$0xff]
  %v49 = vld [vmem:[%s1 + $0x70] sm:$0xff]
  %v50 = vld [vmem:[%s1 + $0x78] sm:$0xff]
  %v51 = vld [vmem:[%s2] sm:$0x1]
  %v53 = vlaneseq
  %v54 = vshrl.u32 %v53, 7
  %v55 = vsub.s32 0, %v54
  %v56 = vrot.slane %v51, %v55
  %58 = vmatprep.subr.mxu0 0.0
  %59 = vmatpush1.msra.mxu0 %v35
  %60 = vmatprep.subr.mxu0 0.0
  %61 = vmatpush1.msra.mxu0 %v36
  %62 = vmatprep.subr.mxu0 0.0
  %63 = vmatpush1.msra.mxu0 %v37
  %64 = vmatprep.subr.mxu0 0.0
  %65 = vmatpush1.msra.mxu0 %v38
  %66 = vmatprep.subr.mxu0 0.0
  %67 = vmatpush1.msra.mxu0 %v39
  %68 = vmatprep.subr.mxu0 0.0
  %69 = vmatpush1.msra.mxu0 %v40
  %70 = vmatprep.subr.mxu0 0.0
  %71 = vmatpush1.msra.mxu0 %v41
  %72 = vmatprep.subr.mxu0 0.0
  %73 = vmatpush1.msra.mxu0 %v42
  %74 = vmatprep.subr.mxu0 0.0
  %75 = vmatpush1.msra.mxu0 %v43
  %76 = vmatprep.subr.mxu0 0.0
  %77 = vmatpush1.msra.mxu0 %v44
  %78 = vmatprep.subr.mxu0 0.0
  %79 = vmatpush1.msra.mxu0 %v45
  %80 = vmatprep.subr.mxu0 0.0
  %81 = vmatpush1.msra.mxu0 %v46
  %82 = vmatprep.subr.mxu0 0.0
  %83 = vmatpush1.msra.mxu0 %v47
  %84 = vmatprep.subr.mxu0 0.0
  %85 = vmatpush1.msra.mxu0 %v48
  %86 = vmatprep.subr.mxu0 0.0
  %87 = vmatpush1.msra.mxu0 %v49
  %88 = vmatprep.subr.mxu0 0.0
  %89 = vmatpush1.msra.mxu0 %v50
  %90 = vmatprep.subr.mxu0 0.0
  %91 = vmatpush1.msra.mxu0 0.0
  %92 = vmatprep.subr.mxu0 0.0
  %93 = vmatpush1.msra.mxu0 0.0
  %94 = vmatprep.subr.mxu0 0.0
  %95 = vmatpush1.msra.mxu0 0.0
  %96 = vmatprep.subr.mxu0 0.0
  %97 = vmatpush1.msra.mxu0 0.0
  %98 = vmatprep.subr.mxu0 0.0
  %99 = vmatpush1.msra.mxu0 0.0
  %100 = vmatprep.subr.mxu0 0.0
  %101 = vmatpush1.msra.mxu0 0.0
  %102 = vmatprep.subr.mxu0 0.0
  %103 = vmatpush1.msra.mxu0 0.0
  %104 = vmatprep.subr.mxu0 0.0
  %105 = vmatpush1.msra.mxu0 0.0
  %106 = vmatprep.subr.mxu0 0.0
  %107 = vmatpush1.msra.mxu0 0.0
  %108 = vmatprep.subr.mxu0 0.0
  %109 = vmatpush1.msra.mxu0 0.0
  %110 = vmatprep.subr.mxu0 0.0
  %111 = vmatpush1.msra.mxu0 0.0
  %112 = vmatprep.subr.mxu0 0.0
  %113 = vmatpush1.msra.mxu0 0.0
  %114 = vmatprep.subr.mxu0 0.0
  %115 = vmatpush1.msra.mxu0 0.0
  %116 = vmatprep.subr.mxu0 0.0
  %117 = vmatpush1.msra.mxu0 0.0
  %118 = vmatprep.subr.mxu0 0.0
  %119 = vmatpush1.msra.mxu0 0.0
  %120 = vmatprep.subr.mxu0 0.0
  %121 = vmatpush1.msra.mxu0 0.0
  %122 = vmatprep.mubr.f32.mxu0 0.0
  %123 = vmatmul.mubr.f32.gmra.mrb[0].mxu0 %v34
  %v124 = vpop.f32.mrb[0].mxu0
  %v125 = vadd.f32 %v56, %v124
  %v126 = vpop.f32.mrb[0].mxu0
  %127 = vdwg.mxu0
  %v128 = vmul.f32 %v125, %v125
  %vm129 = vcmask 130048
  %v130 = vsel %vm129, %v128, 0.0
  %131 = vadd.xlane.f32.xlu0 %v130
  %v132 = vpop.xlane.xlu0 %131
  %v134 = vsel %vm129, %v125, 0
  %136 = vmatprep.subr.mxu0 0.0
  %137 = vmatpush1.xpose.msra.mxu0 %v134
  %138 = vmatprep.subr.mxu0 0.0
  %139 = vmatpush1.xpose.msra.mxu0 0.0
  %140 = vmatprep.subr.mxu0 0.0
  %141 = vmatpush1.xpose.msra.mxu0 0.0
  %142 = vmatprep.subr.mxu0 0.0
  %143 = vmatpush1.xpose.msra.mxu0 0.0
  %144 = vmatprep.subr.mxu0 0.0
  %145 = vmatpush1.xpose.msra.mxu0 0.0
  %146 = vmatprep.subr.mxu0 0.0
  %147 = vmatpush1.xpose.msra.mxu0 0.0
  %148 = vmatprep.subr.mxu0 0.0
  %149 = vmatpush1.xpose.msra.mxu0 0.0
  %150 = vmatprep.subr.mxu0 0.0
  %151 = vmatpush1.xpose.msra.mxu0 0.0
  %152 = vmatprep.subr.mxu0 0.0
  %153 = vmatpush1.xpose.msra.mxu0 0.0
  %154 = vmatprep.subr.mxu0 0.0
  %155 = vmatpush1.xpose.msra.mxu0 0.0
  %156 = vmatprep.subr.mxu0 0.0
  %157 = vmatpush1.xpose.msra.mxu0 0.0
  %158 = vmatprep.subr.mxu0 0.0
  %159 = vmatpush1.xpose.msra.mxu0 0.0
  %160 = vmatprep.subr.mxu0 0.0
  %161 = vmatpush1.xpose.msra.mxu0 0.0
  %162 = vmatprep.subr.mxu0 0.0
  %163 = vmatpush1.xpose.msra.mxu0 0.0
  %164 = vmatprep.subr.mxu0 0.0
  %165 = vmatpush1.xpose.msra.mxu0 0.0
  %166 = vmatprep.subr.mxu0 0.0
  %167 = vmatpush1.xpose.msra.mxu0 0.0
  %168 = vmatprep.subr.mxu0 0.0
  %169 = vmatpush1.xpose.msra.mxu0 0.0
  %170 = vmatprep.subr.mxu0 0.0
  %171 = vmatpush1.xpose.msra.mxu0 0.0
  %172 = vmatprep.subr.mxu0 0.0
  %173 = vmatpush1.xpose.msra.mxu0 0.0
  %174 = vmatprep.subr.mxu0 0.0
  %175 = vmatpush1.xpose.msra.mxu0 0.0
  %176 = vmatprep.subr.mxu0 0.0
  %177 = vmatpush1.xpose.msra.mxu0 0.0
  %178 = vmatprep.subr.mxu0 0.0
  %179 = vmatpush1.xpose.msra.mxu0 0.0
  %180 = vmatprep.subr.mxu0 0.0
  %181 = vmatpush1.xpose.msra.mxu0 0.0
  %182 = vmatprep.subr.mxu0 0.0
  %183 = vmatpush1.xpose.msra.mxu0 0.0
  %184 = vmatprep.subr.mxu0 0.0
  %185 = vmatpush1.xpose.msra.mxu0 0.0
  %186 = vmatprep.subr.mxu0 0.0
  %187 = vmatpush1.xpose.msra.mxu0 0.0
  %188 = vmatprep.subr.mxu0 0.0
  %189 = vmatpush1.xpose.msra.mxu0 0.0
  %190 = vmatprep.subr.mxu0 0.0
  %191 = vmatpush1.xpose.msra.mxu0 0.0
  %192 = vmatprep.subr.mxu0 0.0
  %193 = vmatpush1.xpose.msra.mxu0 0.0
  %194 = vmatprep.subr.mxu0 0.0
  %195 = vmatpush1.xpose.msra.mxu0 0.0
  %196 = vmatprep.subr.mxu0 0.0
  %197 = vmatpush1.xpose.msra.mxu0 0.0
  %198 = vmatprep.subr.mxu0 0.0
  %199 = vmatpush1.xpose.msra.mxu0 0.0
  %200 = vmatprep.mubr.f32.mxu0 0.0
  %201 = vmatmul.mubr.f32.gmra.mrb[0].mxu0 %v134
  %v202 = vpop.f32.mrb[0].mxu0
  %v203 = vadd.f32 0.0, %v202
  %v204 = vpop.f32.mrb[0].mxu0
  %205 = vdwg.mxu0
  %206 = vxpose.xlu0.b32.start [1/16] %v132, 128
  %207 = vxpose.xlu0.b32.cont [2/16] 0.0, 128
  %208 = vxpose.xlu0.b32.cont [3/16] 0.0, 128
  %209 = vxpose.xlu0.b32.cont [4/16] 0.0, 128
  %210 = vxpose.xlu0.b32.cont [5/16] 0.0, 128
  %211 = vxpose.xlu0.b32.cont [6/16] 0.0, 128
  %212 = vxpose.xlu0.b32.cont [7/16] 0.0, 128
  %213 = vxpose.xlu0.b32.cont [8/16] 0.0, 128
  %214 = vxpose.xlu0.b32.cont [9/16] 0.0, 128
  %215 = vxpose.xlu0.b32.cont [10/16] 0.0, 128
  %216 = vxpose.xlu0.b32.cont [11/16] 0.0, 128
  %217 = vxpose.xlu0.b32.cont [12/16] 0.0, 128
  %218 = vxpose.xlu0.b32.cont [13/16] 0.0, 128
  %219 = vxpose.xlu0.b32.cont [14/16] 0.0, 128
  %220 = vxpose.xlu0.b32.cont [15/16] 0.0, 128
  %221 = vxpose.xlu0.b32.end [16/16] 0.0, 128
  %v222 = vpop.trf.xlu0
  %v223 = vpop.trf.xlu0
  %v224 = vpop.trf.xlu0
  %v225 = vpop.trf.xlu0
  %v226 = vpop.trf.xlu0
  %v227 = vpop.trf.xlu0
  %v228 = vpop.trf.xlu0
  %v229 = vpop.trf.xlu0
  %v230 = vpop.trf.xlu0
  %v231 = vpop.trf.xlu0
  %v232 = vpop.trf.xlu0
  %v233 = vpop.trf.xlu0
  %v234 = vpop.trf.xlu0
  %v235 = vpop.trf.xlu0
  %v236 = vpop.trf.xlu0
  %v237 = vpop.trf.xlu0
  %v238 = vlaneseq
  %v239 = vshrl.u32 %v238, 7
  %v240 = vsub.s32 0, %v239
  %v241 = vrot.slane %v222, %v240
  %v242 = vadd.f32 %v132, %v241
  %v243 = vmul.f32 %v203, 2.0
  %v244 = vsub.f32 %v242, %v243
  %v245 = vmax.f32 %v244, 0.0
  %v246 = vmul.f32 %v245, -1.0
  %v247 = vmul.f32 %v246, 1.442695
  %v248 = vpow.pop %v247
  %vm249 = vcmask 64512
  %v250 = vsel %vm249, %v248, 0.0
  %251 = vadd.xlane.f32.xlu0 %v250
  %v252 = vpop.xlane.xlu0 %251
  %v253 = vld [vmem:[%s3] sm:$0xff]
  %v254 = vld [vmem:[%s3 + $0x8] sm:$0xff]
  %v255 = vld [vmem:[%s4] sm:$0x1]
  %v257 = vlaneseq
  %v258 = vshrl.u32 %v257, 7
  %v259 = vsub.s32 0, %v258
  %v260 = vrot.slane %v255, %v259
  %262 = vmatprep.subr.mxu0 0.0
  %263 = vmatpush1.msra.mxu0 %v253
  %264 = vmatprep.subr.mxu0 0.0
  %265 = vmatpush1.msra.mxu0 %v254
  %266 = vmatprep.subr.mxu0 0.0
  %267 = vmatpush1.msra.mxu0 0.0
  %268 = vmatprep.subr.mxu0 0.0
  %269 = vmatpush1.msra.mxu0 0.0
  %270 = vmatprep.subr.mxu0 0.0
  %271 = vmatpush1.msra.mxu0 0.0
  %272 = vmatprep.subr.mxu0 0.0
  %273 = vmatpush1.msra.mxu0 0.0
  %274 = vmatprep.subr.mxu0 0.0
  %275 = vmatpush1.msra.mxu0 0.0
  %276 = vmatprep.subr.mxu0 0.0
  %277 = vmatpush1.msra.mxu0 0.0
  %278 = vmatprep.subr.mxu0 0.0
  %279 = vmatpush1.msra.mxu0 0.0
  %280 = vmatprep.subr.mxu0 0.0
  %281 = vmatpush1.msra.mxu0 0.0
  %282 = vmatprep.subr.mxu0 0.0
  %283 = vmatpush1.msra.mxu0 0.0
  %284 = vmatprep.subr.mxu0 0.0
  %285 = vmatpush1.msra.mxu0 0.0
  %286 = vmatprep.subr.mxu0 0.0
  %287 = vmatpush1.msra.mxu0 0.0
  %288 = vmatprep.subr.mxu0 0.0
  %289 = vmatpush1.msra.mxu0 0.0
  %290 = vmatprep.subr.mxu0 0.0
  %291 = vmatpush1.msra.mxu0 0.0
  %292 = vmatprep.subr.mxu0 0.0
  %293 = vmatpush1.msra.mxu0 0.0
  %294 = vmatprep.subr.mxu0 0.0
  %295 = vmatpush1.msra.mxu0 0.0
  %296 = vmatprep.subr.mxu0 0.0
  %297 = vmatpush1.msra.mxu0 0.0
  %298 = vmatprep.subr.mxu0 0.0
  %299 = vmatpush1.msra.mxu0 0.0
  %300 = vmatprep.subr.mxu0 0.0
  %301 = vmatpush1.msra.mxu0 0.0
  %302 = vmatprep.subr.mxu0 0.0
  %303 = vmatpush1.msra.mxu0 0.0
  %304 = vmatprep.subr.mxu0 0.0
  %305 = vmatpush1.msra.mxu0 0.0
  %306 = vmatprep.subr.mxu0 0.0
  %307 = vmatpush1.msra.mxu0 0.0
  %308 = vmatprep.subr.mxu0 0.0
  %309 = vmatpush1.msra.mxu0 0.0
  %310 = vmatprep.subr.mxu0 0.0
  %311 = vmatpush1.msra.mxu0 0.0
  %312 = vmatprep.subr.mxu0 0.0
  %313 = vmatpush1.msra.mxu0 0.0
  %314 = vmatprep.subr.mxu0 0.0
  %315 = vmatpush1.msra.mxu0 0.0
  %316 = vmatprep.subr.mxu0 0.0
  %317 = vmatpush1.msra.mxu0 0.0
  %318 = vmatprep.subr.mxu0 0.0
  %319 = vmatpush1.msra.mxu0 0.0
  %320 = vmatprep.subr.mxu0 0.0
  %321 = vmatpush1.msra.mxu0 0.0
  %322 = vmatprep.subr.mxu0 0.0
  %323 = vmatpush1.msra.mxu0 0.0
  %324 = vmatprep.subr.mxu0 0.0
  %325 = vmatpush1.msra.mxu0 0.0
  %326 = vmatprep.mubr.f32.mxu0 0.0
  %327 = vmatmul.mubr.f32.gmra.mrb[0].mxu0 %v134
  %v328 = vpop.f32.mrb[0].mxu0
  %v329 = vadd.f32 %v260, %v328
  %v330 = vpop.f32.mrb[0].mxu0
  %331 = vdwg.mxu0
  %v332 = vmax.f32 %v329, 0.0
  %v333 = vld [vmem:[%s5] sm:$0x1]
  %v335 = vlaneseq
  %v336 = vshrl.u32 %v335, 7
  %v337 = vsub.s32 0, %v336
  %v338 = vrot.slane %v333, %v337
  %v340 = vmul.f32 %v332, %v338
  %341 = vadd.xlane.f32.xlu0 %v340
  %v342 = vpop.xlane.xlu0 %341
  %s343 = sld [smem:[#allocation2]]
  %v344 = vstv %s343
  %v345 = vadd.f32 %v342, %v344
  %v346 = vsub.f32 0.0, %v345
  %v347 = vmul.f32 %v346, 1.442695
  %v348 = vpow.pop %v347
  %v349 = vadd.f32 %v348, 1.0
  %v350 = vrcp.pop %v349
  %v351 = vrcp.pop %v252
  %v352 = vmul.f32 %v350, %v351
  %353 = vxpose.xlu0.b32.start [1/16] %v352, 128
  %354 = vxpose.xlu0.b32.cont [2/16] 0.0, 128
  %355 = vxpose.xlu0.b32.cont [3/16] 0.0, 128
  %356 = vxpose.xlu0.b32.cont [4/16] 0.0, 128
  %357 = vxpose.xlu0.b32.cont [5/16] 0.0, 128
  %358 = vxpose.xlu0.b32.cont [6/16] 0.0, 128
  %359 = vxpose.xlu0.b32.cont [7/16] 0.0, 128
  %360 = vxpose.xlu0.b32.cont [8/16] 0.0, 128
  %361 = vxpose.xlu0.b32.cont [9/16] 0.0, 128
  %362 = vxpose.xlu0.b32.cont [10/16] 0.0, 128
  %363 = vxpose.xlu0.b32.cont [11/16] 0.0, 128
  %364 = vxpose.xlu0.b32.cont [12/16] 0.0, 128
  %365 = vxpose.xlu0.b32.cont [13/16] 0.0, 128
  %366 = vxpose.xlu0.b32.cont [14/16] 0.0, 128
  %367 = vxpose.xlu0.b32.cont [15/16] 0.0, 128
  %368 = vxpose.xlu0.b32.end [16/16] 0.0, 128
  %v369 = vpop.trf.xlu0
  %v370 = vpop.trf.xlu0
  %v371 = vpop.trf.xlu0
  %v372 = vpop.trf.xlu0
  %v373 = vpop.trf.xlu0
  %v374 = vpop.trf.xlu0
  %v375 = vpop.trf.xlu0
  %v376 = vpop.trf.xlu0
  %v377 = vpop.trf.xlu0
  %v378 = vpop.trf.xlu0
  %v379 = vpop.trf.xlu0
  %v380 = vpop.trf.xlu0
  %v381 = vpop.trf.xlu0
  %v382 = vpop.trf.xlu0
  %v383 = vpop.trf.xlu0
  %v384 = vpop.trf.xlu0
  %v385 = vlaneseq
  %v386 = vshrl.u32 %v385, 7
  %v387 = vsub.s32 0, %v386
  %v388 = vrot.slane %v369, %v387
  %v389 = vmul.f32 %v248, %v388
  %v390 = vsel %vm249, %v389, 0.0
  %391 = vadd.xlane.f32.xlu0 %v390
  %v392 = vpop.xlane.xlu0 %391
  %v393 = vadd.f32 %v392, 1e-05
  %v394 = vld [vmem:[%s6] sm:$0xff]
  %s395 = sld [smem:[#allocation3]]
  %v397 = vsel %vm249, %v389, 0
  %399 = vmatprep.subr.mxu0 0.0
  %400 = vmatpush1.msra.mxu0 %v394
  %401 = vmatprep.subr.mxu0 0.0
  %402 = vmatpush1.msra.mxu0 0.0
  %403 = vmatprep.subr.mxu0 0.0
  %404 = vmatpush1.msra.mxu0 0.0
  %405 = vmatprep.subr.mxu0 0.0
  %406 = vmatpush1.msra.mxu0 0.0
  %407 = vmatprep.subr.mxu0 0.0
  %408 = vmatpush1.msra.mxu0 0.0
  %409 = vmatprep.subr.mxu0 0.0
  %410 = vmatpush1.msra.mxu0 0.0
  %411 = vmatprep.subr.mxu0 0.0
  %412 = vmatpush1.msra.mxu0 0.0
  %413 = vmatprep.subr.mxu0 0.0
  %414 = vmatpush1.msra.mxu0 0.0
  %415 = vmatprep.subr.mxu0 0.0
  %416 = vmatpush1.msra.mxu0 0.0
  %417 = vmatprep.subr.mxu0 0.0
  %418 = vmatpush1.msra.mxu0 0.0
  %419 = vmatprep.subr.mxu0 0.0
  %420 = vmatpush1.msra.mxu0 0.0
  %421 = vmatprep.subr.mxu0 0.0
  %422 = vmatpush1.msra.mxu0 0.0
  %423 = vmatprep.subr.mxu0 0.0
  %424 = vmatpush1.msra.mxu0 0.0
  %425 = vmatprep.subr.mxu0 0.0
  %426 = vmatpush1.msra.mxu0 0.0
  %427 = vmatprep.subr.mxu0 0.0
  %428 = vmatpush1.msra.mxu0 0.0
  %429 = vmatprep.subr.mxu0 0.0
  %430 = vmatpush1.msra.mxu0 0.0
  %431 = vmatprep.subr.mxu0 0.0
  %432 = vmatpush1.msra.mxu0 0.0
  %433 = vmatprep.subr.mxu0 0.0
  %434 = vmatpush1.msra.mxu0 0.0
  %435 = vmatprep.subr.mxu0 0.0
  %436 = vmatpush1.msra.mxu0 0.0
  %437 = vmatprep.subr.mxu0 0.0
  %438 = vmatpush1.msra.mxu0 0.0
  %439 = vmatprep.subr.mxu0 0.0
  %440 = vmatpush1.msra.mxu0 0.0
  %441 = vmatprep.subr.mxu0 0.0
  %442 = vmatpush1.msra.mxu0 0.0
  %443 = vmatprep.subr.mxu0 0.0
  %444 = vmatpush1.msra.mxu0 0.0
  %445 = vmatprep.subr.mxu0 0.0
  %446 = vmatpush1.msra.mxu0 0.0
  %447 = vmatprep.subr.mxu0 0.0
  %448 = vmatpush1.msra.mxu0 0.0
  %449 = vmatprep.subr.mxu0 0.0
  %450 = vmatpush1.msra.mxu0 0.0
  %451 = vmatprep.subr.mxu0 0.0
  %452 = vmatpush1.msra.mxu0 0.0
  %453 = vmatprep.subr.mxu0 0.0
  %454 = vmatpush1.msra.mxu0 0.0
  %455 = vmatprep.subr.mxu0 0.0
  %456 = vmatpush1.msra.mxu0 0.0
  %457 = vmatprep.subr.mxu0 0.0
  %458 = vmatpush1.msra.mxu0 0.0
  %459 = vmatprep.subr.mxu0 0.0
  %460 = vmatpush1.msra.mxu0 0.0
  %461 = vmatprep.subr.mxu0 0.0
  %462 = vmatpush1.msra.mxu0 0.0
  %463 = vmatprep.mubr.f32.mxu0 0.0
  %464 = vmatmul.mubr.f32.gmra.mrb[0].mxu0 %v397
  %v465 = vpop.f32.mrb[0].mxu0
  %v466 = vadd.f32 0.0, %v465
  %v467 = vpop.f32.mrb[0].mxu0
  %468 = vdwg.mxu0
  %v469 = vrcp.pop %v393
  %s470 = ssub.f32 1.0, %s395
  %v471 = vstv %s470
  %v472 = vmul.f32 %v471, %v394
  %v473 = vrcp.pop 0.25
  %s474 = vtos %v473
  %s475 = smul.f32 %s395, %s474
  %v476 = vmul.f32 %v466, %v469
  %v477 = vstv %s475
  %v478 = vmul.f32 %v477, %v476
  %v479 = vadd.f32 %v472, %v478
  %480 = vst [vmem:[%s9] sm:$0xff] %v479
  // Predicated region
  $region38: #{_lambda_.1} parent=0 // pred_check
    _
  $region39: #{_lambda_.1} parent=0 // pred_check_branch
    %482 = sbr.rel (0) target = $region41
  $region40: #{_lambda_.1} parent=0 // pred_region
    _
  $region41: #{_lambda_.1} parent=0 // pred_fallthru
    _
  // Predicated region
  $region42: #{_lambda_.1} parent=0 // pred_check
    _
  $region43: #{_lambda_.1} parent=0 // pred_check_branch
    %484 = sbr.rel (0) target = $region45
  $region44: #{_lambda_.1} parent=0 // pred_region
    _
  $region45: #{_lambda_.1} parent=0 // pred_fallthru
    _

</llo_original>
